<compile_context>
chip_gen: v5e
topology: v5e:2x2
jax: 0.10.0
libtpu: 0.0.40
codegen_flags: <defaults>
</compile_context>

<pallas_src>
import jax
import jax.numpy as jnp
import numpy as np
from jax.experimental import pallas as pl
from jax.experimental.pallas import tpu as pltpu


# --------------------------------------------------------------------------- #
# Kernel
# --------------------------------------------------------------------------- #
def _transition_kernel(x_ref, scale_ref, shift_ref, w_ref, o_ref):
    # x_ref:     (tile_h, W//2, 2*Cin)  one batch element; even/odd-column channels
    #                                   concatenated along the lane axis
    # scale_ref: (1, 1, 2*Cin)          folded BN scale (tiled x2), f32
    # shift_ref: (1, 1, 2*Cin)          folded BN shift (tiled x2), f32
    # w_ref:     (2*Cin, Cout)          conv weight stacked twice, 0.25 pool factor
    #                                   folded in (W-pool happens in the contraction)
    # o_ref:     (tile_h//2, W//2, Cout)
    x = x_ref[...].astype(jnp.float32)

    # BatchNorm (inference affine) + ReLU -- elementwise on the VPU, f32.
    y = jnp.maximum(x * scale_ref[...] + shift_ref[...], jnp.float32(0.0))

    th, wh, c2 = y.shape
    # H-direction 2x pool: split only the LEADING dim (free, no relayout) and add
    # adjacent row pairs.
    yp = y.reshape(th // 2, 2, wh, c2)
    pooled = yp[:, 0] + yp[:, 1]                              # (th//2, W//2, 2*Cin)

    # 1x1 conv (+ W-direction pool via the doubled weight) == matmul on the MXU.
    z = jnp.dot(pooled.reshape((th // 2) * wh, c2).astype(w_ref.dtype),
                w_ref[...], preferred_element_type=jnp.float32)

    o_ref[...] = z.reshape(th // 2, wh, -1).astype(o_ref.dtype)


# --------------------------------------------------------------------------- #
# Tiling / VMEM helpers
# --------------------------------------------------------------------------- #
def _vmem_capacity_bytes():
    """Physical VMEM of the current TPU generation (fallback: v7x per-core 64 MiB)."""
    try:
        return int(pltpu.get_tpu_info().vmem_capacity_bytes)
    except Exception:
        return 64 << 20


def _choose_tile_h(N, H, bytes_per_row, budget_bytes):
    """Largest even divisor of H whose (input + output) block fits the budget.

    Prefers the whole image height as one block; only shrinks (by at most 2x) to
    create >= 2 total grid steps so both v7x TensorCores get work.
    """
    divisors = [d for d in range(2, H + 1, 2) if H % d == 0]
    fitting = [d for d in divisors if d * bytes_per_row <= budget_bytes]
    if not fitting:
        # TODO(synk): add W tiling for inputs whose 2-row slab exceeds the budget.
        return 2
    best = max(fitting)
    if N * (H // best) >= 2:
        return best
    alt = [d for d in fitting if H // d >= 2 and 2 * d >= best]
    return max(alt) if alt else best


# --------------------------------------------------------------------------- #
# Entry points
# --------------------------------------------------------------------------- #
def transition_forward_nhwc(x_nhwc, gamma, beta, running_mean, running_var, conv_w,
                            eps=1e-5, tile_h=None, use_bf16=False):
    """Channels-last entry point (recommended: no layout transposes at all).

    x_nhwc: (N, H, W, Cin).  conv_w: (Cout, Cin, 1, 1).
    Returns (N, H//2, W//2, Cout) float32.
    """
    N, H, W, cin = x_nhwc.shape
    cout = conv_w.shape[0]
    assert H % 2 == 0 and W % 2 == 0, "even spatial dims required for 2x2 pool"

    # Fold BN (inference form) into a per-channel affine.
    scale = gamma / jnp.sqrt(running_var + eps)                 # (Cin,)
    shift = beta - running_mean * scale                         # (Cin,)

    x_dtype = jnp.bfloat16 if use_bf16 else jnp.float32
    w_dtype = jnp.bfloat16 if use_bf16 else jnp.float32

    # FREE metadata-only reshape: even/odd-column channels side by side on lanes.
    x2 = x_nhwc.astype(x_dtype).reshape(N, H, W // 2, 2 * cin)

    # 1x1 conv as a matmul; 0.25 avg-pool factor folded in; weight stacked twice so
    # the W-direction pool is absorbed by the MXU contraction (K = 2*Cin).
    w_mat = jnp.transpose(conv_w[:, :, 0, 0], (1, 0)) * jnp.float32(0.25)  # (Cin, Cout)
    w2 = jnp.concatenate([w_mat, w_mat], axis=0).astype(w_dtype)           # (2Cin, Cout)
    scale2 = jnp.tile(scale, 2).reshape(1, 1, 2 * cin).astype(jnp.float32)
    shift2 = jnp.tile(shift, 2).reshape(1, 1, 2 * cin).astype(jnp.float32)

    # Generation-aware VMEM budget (v5e/v6e: 128 MiB phys, v7x: 64 MiB per core).
    cap = _vmem_capacity_bytes()
    vmem_limit = min(cap // 2, 64 << 20)
    block_budget = vmem_limit // 3          # 2x double-buffered in+out + weights/slack

    if tile_h is None:
        bytes_per_row = ((W // 2) * (2 * cin) * jnp.dtype(x_dtype).itemsize  # input
                         + (W // 2) * cout * 2)                              # output (f32, th/2 rows)
        tile_h = _choose_tile_h(N, H, bytes_per_row, block_budget)
    assert H % tile_h == 0 and tile_h % 2 == 0

    return pl.pallas_call(
        _transition_kernel,
        out_shape=jax.ShapeDtypeStruct((N, H // 2, W // 2, cout), jnp.float32),
        grid_spec=pltpu.PrefetchScalarGridSpec(
            num_scalar_prefetch=0,
            grid=(N, H // tile_h),
            in_specs=[
                pl.BlockSpec((None, tile_h, W // 2, 2 * cin), lambda n, h: (n, h, 0, 0)),
                pl.BlockSpec((1, 1, 2 * cin), lambda n, h: (0, 0, 0)),
                pl.BlockSpec((1, 1, 2 * cin), lambda n, h: (0, 0, 0)),
                pl.BlockSpec((2 * cin, cout), lambda n, h: (0, 0)),
            ],
            out_specs=pl.BlockSpec((None, tile_h // 2, W // 2, cout),
                                   lambda n, h: (n, h, 0, 0)),
        ),
        compiler_params=pltpu.CompilerParams(
            dimension_semantics=("parallel", "parallel"),
            vmem_limit_bytes=vmem_limit),
    )(x2, scale2, shift2, w2)


def transition_forward(x_nchw, gamma, beta, running_mean, running_var, conv_w,
                       eps=1e-5, tile_h=None, use_bf16=False):
    """PyTorch-parity wrapper: (N, Cin, H, W) -> (N, Cout, H//2, W//2).

    NOTE: this wrapper pays two full HBM transpose passes purely for NCHW parity.
    Production callers should keep activations channels-last and call
    transition_forward_nhwc directly (transpose-free).
    """
    x_nhwc = jnp.transpose(x_nchw, (0, 2, 3, 1))
    out_nhwc = transition_forward_nhwc(
        x_nhwc, gamma, beta, running_mean, running_var, conv_w,
        eps=eps, tile_h=tile_h, use_bf16=use_bf16)
    return jnp.transpose(out_nhwc, (0, 3, 1, 2))


# --------------------------------------------------------------------------- #
# Pure-JAX references
# --------------------------------------------------------------------------- #
def _reference_nhwc(x_nhwc, gamma, beta, running_mean, running_var, conv_w, eps=1e-5):
    scale = gamma / jnp.sqrt(running_var + eps)
    shift = beta - running_mean * scale
    y = jnp.maximum(x_nhwc * scale + shift, 0.0)
    z = jnp.einsum("nhwc,oc->nhwo", y, conv_w[:, :, 0, 0])
    N, H, W, Co = z.shape
    z = z.reshape(N, H // 2, 2, W // 2, 2, Co)
    return z.mean(axis=(2, 4))


def _reference_nchw(x_nchw, gamma, beta, running_mean, running_var, conv_w, eps=1e-5):
    ref = _reference_nhwc(jnp.transpose(x_nchw, (0, 2, 3, 1)),
                          gamma, beta, running_mean, running_var, conv_w, eps)
    return jnp.transpose(ref, (0, 3, 1, 2))


# --------------------------------------------------------------------------- #
# Self-test
# --------------------------------------------------------------------------- #
if __name__ == "__main__":
    key = jax.random.PRNGKey(0)
    k1, k2, k3, k4, k5, k6 = jax.random.split(key, 6)

    # Small shapes for the self-test (Transition(inplanes=4, outplanes=8)).
    # Real DenseNet transitions (e.g. 56x56x256->128) are the actual perf target.
    N, Cin, Cout, H, W = 2, 4, 8, 16, 16

    x_nhwc = jax.random.normal(k1, (N, H, W, Cin), dtype=jnp.float32)
    gamma = jax.random.uniform(k2, (Cin,), minval=0.5, maxval=1.5, dtype=jnp.float32)
    beta = jax.random.normal(k3, (Cin,), dtype=jnp.float32) * 0.1
    running_mean = jax.random.normal(k4, (Cin,), dtype=jnp.float32) * 0.1
    running_var = jax.random.uniform(k5, (Cin,), minval=0.5, maxval=1.5, dtype=jnp.float32)
    conv_w = jax.random.normal(k6, (Cout, Cin, 1, 1), dtype=jnp.float32) * 0.1

    ref_nhwc = _reference_nhwc(x_nhwc, gamma, beta, running_mean, running_var, conv_w)

    # 1) Primary path: channels-last, f32, auto tile (whole image height per block).
    out = jax.block_until_ready(transition_forward_nhwc(
        x_nhwc, gamma, beta, running_mean, running_var, conv_w))
    assert out.shape == (N, H // 2, W // 2, Cout), out.shape
    if not np.allclose(np.asarray(out), np.asarray(ref_nhwc), atol=1e-4, rtol=1e-4):
        raise AssertionError("NHWC f32 kernel output mismatch vs reference")

    # 2) Multi-tile grid (exercises the (N, H/tile_h) pipeline explicitly).
    out_tiled = jax.block_until_ready(transition_forward_nhwc(
        x_nhwc, gamma, beta, running_mean, running_var, conv_w, tile_h=8))
    if not np.allclose(np.asarray(out_tiled), np.asarray(ref_nhwc), atol=1e-4, rtol=1e-4):
        raise AssertionError("NHWC tiled kernel output mismatch vs reference")

    # 3) bf16 streaming path (halves HBM reads on v6e/v7x) -- relaxed tolerance,
    #    since activations/weights are rounded to bf16 before the MXU.
    out_bf16 = jax.block_until_ready(transition_forward_nhwc(
        x_nhwc, gamma, beta, running_mean, running_var, conv_w, use_bf16=True))
    if not np.allclose(np.asarray(out_bf16), np.asarray(ref_nhwc), atol=5e-2, rtol=5e-2):
        raise AssertionError("NHWC bf16 kernel output mismatch vs reference")

    # 4) PyTorch-parity NCHW wrapper (pays two HBM transposes -- parity only).
    x_nchw = jnp.transpose(x_nhwc, (0, 3, 1, 2))
    out_nchw = jax.block_until_ready(transition_forward(
        x_nchw, gamma, beta, running_mean, running_var, conv_w))
    ref_nchw = _reference_nchw(x_nchw, gamma, beta, running_mean, running_var, conv_w)
    assert out_nchw.shape == (N, Cout, H // 2, W // 2), out_nchw.shape
    if not np.allclose(np.asarray(out_nchw), np.asarray(ref_nchw), atol=1e-4, rtol=1e-4):
        raise AssertionError("NCHW parity wrapper output mismatch vs reference")

    print("KERNEL_OK")
</pallas_src>

<mosaic_0001>
module attributes {stable_mosaic.version = 11 : i64} {
  func.func @_transition_kernel(%arg0: i32, %arg1: i32, %arg2: memref<1x16x8x8xf32, #tpu.memory_space<vmem>>, %arg3: memref<1x1x8xf32, #tpu.memory_space<vmem>>, %arg4: memref<1x1x8xf32, #tpu.memory_space<vmem>>, %arg5: memref<8x8xf32, #tpu.memory_space<vmem>>, %arg6: memref<1x8x8x8xf32, #tpu.memory_space<vmem>>) attributes {dimension_semantics = [#tpu.dimension_semantics<parallel>, #tpu.dimension_semantics<parallel>], iteration_bounds = array<i64: 2, 1>, scalar_prefetch = 0 : i64, scratch_operands = 0 : i64, tpu.core_type = #tpu.core_type<tc>, window_params = [{transform_indices = @transform_0, window_bounds = array<i64: 1, 16, 8, 8>}, {pipeline_mode = #tpu.pipeline_mode<synchronous>, transform_indices = @transform_1, window_bounds = array<i64: 1, 1, 8>}, {pipeline_mode = #tpu.pipeline_mode<synchronous>, transform_indices = @transform_2, window_bounds = array<i64: 1, 1, 8>}, {pipeline_mode = #tpu.pipeline_mode<synchronous>, transform_indices = @transform_3, window_bounds = array<i64: 8, 8>}, {transform_indices = @transform_4, window_bounds = array<i64: 1, 8, 8, 8>}]} {
    %c0 = arith.constant 0 : index
    %c0_0 = arith.constant 0 : index
    %c0_1 = arith.constant 0 : index
    %c0_2 = arith.constant 0 : index
    %0 = vector.load %arg2[%c0, %c0_0, %c0_1, %c0_2] : memref<1x16x8x8xf32, #tpu.memory_space<vmem>>, vector<1x16x8x8xf32>
    %1 = vector.shape_cast %0 : vector<1x16x8x8xf32> to vector<16x8x8xf32>
    %c0_3 = arith.constant 0 : index
    %c0_4 = arith.constant 0 : index
    %c0_5 = arith.constant 0 : index
    %2 = vector.load %arg3[%c0_3, %c0_4, %c0_5] : memref<1x1x8xf32, #tpu.memory_space<vmem>>, vector<1x1x8xf32>
    %3 = vector.broadcast %2 : vector<1x1x8xf32> to vector<16x8x8xf32>
    %4 = arith.mulf %1, %3 : vector<16x8x8xf32>
    %c0_6 = arith.constant 0 : index
    %c0_7 = arith.constant 0 : index
    %c0_8 = arith.constant 0 : index
    %5 = vector.load %arg4[%c0_6, %c0_7, %c0_8] : memref<1x1x8xf32, #tpu.memory_space<vmem>>, vector<1x1x8xf32>
    %6 = vector.broadcast %5 : vector<1x1x8xf32> to vector<16x8x8xf32>
    %7 = arith.addf %4, %6 : vector<16x8x8xf32>
    %cst = arith.constant 0.000000e+00 : f32
    %8 = vector.broadcast %cst : f32 to vector<16x8x8xf32>
    %9 = arith.maximumf %7, %8 : vector<16x8x8xf32>
    %10 = vector.shape_cast %9 : vector<16x8x8xf32> to vector<8x2x8x8xf32>
    %11 = vector.extract_strided_slice %10 {offsets = [0, 0, 0, 0], sizes = [8, 1, 8, 8], strides = [1, 1, 1, 1]} : vector<8x2x8x8xf32> to vector<8x1x8x8xf32>
    %12 = vector.shape_cast %11 : vector<8x1x8x8xf32> to vector<8x8x8xf32>
    %13 = vector.extract_strided_slice %10 {offsets = [0, 1, 0, 0], sizes = [8, 1, 8, 8], strides = [1, 1, 1, 1]} : vector<8x2x8x8xf32> to vector<8x1x8x8xf32>
    %14 = vector.shape_cast %13 : vector<8x1x8x8xf32> to vector<8x8x8xf32>
    %15 = arith.addf %12, %14 : vector<8x8x8xf32>
    %16 = vector.shape_cast %15 : vector<8x8x8xf32> to vector<64x8xf32>
    %c0_9 = arith.constant 0 : index
    %c0_10 = arith.constant 0 : index
    %17 = vector.load %arg5[%c0_9, %c0_10] : memref<8x8xf32, #tpu.memory_space<vmem>>, vector<8x8xf32>
    %cst_11 = arith.constant dense<0.000000e+00> : vector<64x8xf32>
    %18 = tpu.matmul %16, %17, %cst_11 {dimension_numbers = #tpu.dot_dimension_numbers<[1], [0], [0], [1], [0, 0, 1, 1], [], []>} : vector<64x8xf32>, vector<8x8xf32>, vector<64x8xf32> -> vector<64x8xf32>
    %19 = vector.shape_cast %18 : vector<64x8xf32> to vector<8x8x8xf32>
    %c0_12 = arith.constant 0 : index
    %c0_13 = arith.constant 0 : index
    %c0_14 = arith.constant 0 : index
    %c0_15 = arith.constant 0 : index
    %20 = vector.load %arg6[%c0_12, %c0_13, %c0_14, %c0_15] : memref<1x8x8x8xf32, #tpu.memory_space<vmem>>, vector<1x8x8x8xf32>
    %21 = vector.shape_cast %20 : vector<1x8x8x8xf32> to vector<8x8x8xf32>
    %22 = vector.shape_cast %19 : vector<8x8x8xf32> to vector<1x8x8x8xf32>
    tpu.vector_store %arg6[%c0_12, %c0_13, %c0_14, %c0_15], %22 {strides = array<i32>} : memref<1x8x8x8xf32, #tpu.memory_space<vmem>>, vector<1x8x8x8xf32>,
    return
  }
  func.func @transform_0(%arg0: i32, %arg1: i32) -> (i32, i32, i32, i32) {
    %c0_i32 = arith.constant 0 : i32
    %c0_i32_0 = arith.constant 0 : i32
    %c0_i32_1 = arith.constant 0 : i32
    return %arg0, %arg1, %c0_i32, %c0_i32_0 : i32, i32, i32, i32
  }
  func.func @transform_1(%arg0: i32, %arg1: i32) -> (i32, i32, i32) {
    %c0_i32 = arith.constant 0 : i32
    %c0_i32_0 = arith.constant 0 : i32
    %c0_i32_1 = arith.constant 0 : i32
    %c0_i32_2 = arith.constant 0 : i32
    return %c0_i32, %c0_i32_0, %c0_i32_1 : i32, i32, i32
  }
  func.func @transform_2(%arg0: i32, %arg1: i32) -> (i32, i32, i32) {
    %c0_i32 = arith.constant 0 : i32
    %c0_i32_0 = arith.constant 0 : i32
    %c0_i32_1 = arith.constant 0 : i32
    %c0_i32_2 = arith.constant 0 : i32
    return %c0_i32, %c0_i32_0, %c0_i32_1 : i32, i32, i32
  }
  func.func @transform_3(%arg0: i32, %arg1: i32) -> (i32, i32) {
    %c0_i32 = arith.constant 0 : i32
    %c0_i32_0 = arith.constant 0 : i32
    %c0_i32_1 = arith.constant 0 : i32
    return %c0_i32, %c0_i32_0 : i32, i32
  }
  func.func @transform_4(%arg0: i32, %arg1: i32) -> (i32, i32, i32, i32) {
    %c0_i32 = arith.constant 0 : i32
    %c0_i32_0 = arith.constant 0 : i32
    %c0_i32_1 = arith.constant 0 : i32
    return %arg0, %arg1, %c0_i32, %c0_i32_0 : i32, i32, i32, i32
  }
}

</mosaic_0001>

<llo_original>
// kernel: tpu_custom_call.1
$region0: #{tpu_custom_call.1}
  #allocation0 [shape = 'u32[]', space=smem, size = 0x4, offset = 0x4, fixed_abs, tag = 'smem constant byte address 0x4 - core index']
  #allocation1 [shape = 'u32[72,128]{1,0:T(1,128)}', space=vmem, size = 0x9000, scoped, tag = 'internal scratch']
  %s0 = inlined_call_operand.vmem [shape: f32[2,16,8,8], index: 0, kind: input, shape index: {}]
  %s1 = inlined_call_operand.vmem [shape: f32[1,1,8], index: 1, kind: input, shape index: {}]
  %s2 = inlined_call_operand.vmem [shape: f32[1,1,8], index: 2, kind: input, shape index: {}]
  %s3 = inlined_call_operand.vmem [shape: f32[8,8], index: 3, kind: input, shape index: {}]
  %s4 = inlined_call_operand.hbm [shape: f32[2,8,8,8], index: 4, kind: output, shape index: {}]
  %s5 = sld [smem:[#allocation0]]
  $region49: #{tpu_custom_call.1} parent=0
    _
  %s7 = ssub.s32 1, %s5
  %s8 = scalar_select 0, %s7, %s5
  $region1: #{tpu_custom_call.1} parent=0
    #allocation2 [shape = 'u8[65536]{0}', space=vmem, size = 0x10000, scoped, tag = 'output window, operand 0']
    #allocation3 [shape = 's32[2]{0}', space=sflag, size = 0x8, scoped, tag = 'scoped memory for tpu_custom_call.1']
    %9 = vsyncpa [#allocation3], 0
    %s10 = scalar_lea.sflag [#allocation3], 1
    %11 = vsyncpa %s10, 0
    loop: start=0, step=1, limit=4
    $region2: #{tpu_custom_call.1} parent=1 // loop_pre_header
      _
    $region3: #{tpu_custom_call.1} parent=1 // loop_header
      %s13 = sphi 0, %s17
      %p14 = scmp.ge.s32.totalorder %s13, 4
      %s20 = sphi 0, %s32
      %s21 = sphi 0, %s28
      %s22 = sphi 0, %s20
      %s23 = sphi 0, %s21
      %s24 = sphi 0, %s22
      %s25 = sphi 0, %s23
      %s37 = sphi 0, %s39
      %s40 = sphi 0, %s37
      %s41 = sphi 0, %s40
      %s57 = sphi 0, %s41
      %s61 = sphi 0, %s61
      %s63 = sphi 0, %s61
      %s64 = sphi 0, %s63
      %s78 = sphi 0, %s64
      %s82 = sphi 0, %s82
      %s84 = sphi 0, %s82
      %s85 = sphi 0, %s84
      %s99 = sphi 0, %s85
      %s103 = sphi 0, %s103
      %s105 = sphi 0, %s103
      %s106 = sphi 0, %s105
      %s120 = sphi 0, %s106
      %s128 = sphi 0, %s130
      %s131 = sphi 0, %s128
      %s132 = sphi 0, %s131
      %s148 = sphi 0, %s132
    $region4: #{tpu_custom_call.1} parent=1 // loop_header_branch
      %16 = sbr.rel (%p14) target = $region8
    $region5: #{tpu_custom_call.1} parent=1 // loop_body
      %s18 = ssub.s32 %s13, 1
      %s19 = ssub.s32 %s13, 2
      %s26 = sadd.s32 1, %s21
      %p27 = scmp.ge.s32.totalorder %s26, 1
      %s28 = scalar_select %p27, 0, %s26
      %s29 = sadd.s32 1, %s20
      %s30 = scalar_select %p27, %s29, %s20
      %p31 = scmp.ge.s32.totalorder %s30, 2
      %s32 = scalar_select %p31, 0, %s30
      %s33 = ssub.s32 %s20, %s32
      %s34 = ssub.s32 %s21, %s28
      %s35 = sor.u32 %s33, %s34
      %p36 = scmp.eq.s32.totalorder %s35, 0
      %s38 = sadd.s32 %s37, 1
      %s39 = scalar_select %p36, %s37, %s38
      %p42 = pneg %p36
      %p43 = scmp.eq.s32.totalorder %s13, 1
      %p44 = por %p42, %p43
      %p45 = scmp.ne.s32.totalorder %s37, %s40
      %p46 = scmp.eq.s32.totalorder %s13, 0
      %p47 = por %p45, %p46
      %p48 = scmp.ne.s32.totalorder %s37, %s40
      %p49 = scmp.eq.s32.totalorder %s18, 1
      %p50 = por %p48, %p49
      %p51 = scmp.ne.s32.totalorder %s40, %s41
      %p52 = scmp.eq.s32.totalorder %s18, 0
      %p53 = por %p51, %p52
      %p54 = scmp.ne.s32.totalorder %s40, %s41
      %p55 = scmp.eq.s32.totalorder %s19, 1
      %p56 = por %p54, %p55
      %p58 = scmp.ne.s32.totalorder %s41, %s57
      %p59 = scmp.eq.s32.totalorder %s19, 0
      %p60 = por %p58, %p59
      %s62 = sadd.s32 %s61, 1
      %p65 = scmp.eq.s32.totalorder %s13, 1
      %p66 = scmp.ne.s32.totalorder %s61, %s63
      %p67 = scmp.eq.s32.totalorder %s13, 0
      %p68 = por %p66, %p67
      %p69 = scmp.ne.s32.totalorder %s61, %s63
      %p70 = scmp.eq.s32.totalorder %s18, 1
      %p71 = por %p69, %p70
      %p72 = scmp.ne.s32.totalorder %s63, %s64
      %p73 = scmp.eq.s32.totalorder %s18, 0
      %p74 = por %p72, %p73
      %p75 = scmp.ne.s32.totalorder %s63, %s64
      %p76 = scmp.eq.s32.totalorder %s19, 1
      %p77 = por %p75, %p76
      %p79 = scmp.ne.s32.totalorder %s64, %s78
      %p80 = scmp.eq.s32.totalorder %s19, 0
      %p81 = por %p79, %p80
      %s83 = sadd.s32 %s82, 1
      %p86 = scmp.eq.s32.totalorder %s13, 1
      %p87 = scmp.ne.s32.totalorder %s82, %s84
      %p88 = scmp.eq.s32.totalorder %s13, 0
      %p89 = por %p87, %p88
      %p90 = scmp.ne.s32.totalorder %s82, %s84
      %p91 = scmp.eq.s32.totalorder %s18, 1
      %p92 = por %p90, %p91
      %p93 = scmp.ne.s32.totalorder %s84, %s85
      %p94 = scmp.eq.s32.totalorder %s18, 0
      %p95 = por %p93, %p94
      %p96 = scmp.ne.s32.totalorder %s84, %s85
      %p97 = scmp.eq.s32.totalorder %s19, 1
      %p98 = por %p96, %p97
      %p100 = scmp.ne.s32.totalorder %s85, %s99
      %p101 = scmp.eq.s32.totalorder %s19, 0
      %p102 = por %p100, %p101
      %s104 = sadd.s32 %s103, 1
      %p107 = scmp.eq.s32.totalorder %s13, 1
      %p108 = scmp.ne.s32.totalorder %s103, %s105
      %p109 = scmp.eq.s32.totalorder %s13, 0
      %p110 = por %p108, %p109
      %p111 = scmp.ne.s32.totalorder %s103, %s105
      %p112 = scmp.eq.s32.totalorder %s18, 1
      %p113 = por %p111, %p112
      %p114 = scmp.ne.s32.totalorder %s105, %s106
      %p115 = scmp.eq.s32.totalorder %s18, 0
      %p116 = por %p114, %p115
      %p117 = scmp.ne.s32.totalorder %s105, %s106
      %p118 = scmp.eq.s32.totalorder %s19, 1
      %p119 = por %p117, %p118
      %p121 = scmp.ne.s32.totalorder %s106, %s120
      %p122 = scmp.eq.s32.totalorder %s19, 0
      %p123 = por %p121, %p122
      %s124 = ssub.s32 %s20, %s32
      %s125 = ssub.s32 %s21, %s28
      %s126 = sor.u32 %s124, %s125
      %p127 = scmp.eq.s32.totalorder %s126, 0
      %s129 = sadd.s32 %s128, 1
      %s130 = scalar_select %p127, %s128, %s129
      %p133 = pneg %p127
      %p134 = scmp.eq.s32.totalorder %s13, 1
      %p135 = por %p133, %p134
      %p136 = scmp.ne.s32.totalorder %s128, %s131
      %p137 = scmp.eq.s32.totalorder %s13, 0
      %p138 = por %p136, %p137
      %p139 = scmp.ne.s32.totalorder %s128, %s131
      %p140 = scmp.eq.s32.totalorder %s18, 1
      %p141 = por %p139, %p140
      %p142 = scmp.ne.s32.totalorder %s131, %s132
      %p143 = scmp.eq.s32.totalorder %s18, 0
      %p144 = por %p142, %p143
      %p145 = scmp.ne.s32.totalorder %s131, %s132
      %p146 = scmp.eq.s32.totalorder %s19, 1
      %p147 = por %p145, %p146
      %p149 = scmp.ne.s32.totalorder %s132, %s148
      %p150 = scmp.eq.s32.totalorder %s19, 0
      %p151 = por %p149, %p150
      %p152 = scmp.le.s32.totalorder 1, %s13
      %p153 = scmp.lt.s32.totalorder %s13, 3
      %p154 = pnand %p152, %p153
      %p155 = pneg %p154
      // Predicated region
      $region9: #{tpu_custom_call.1} parent=5 // pred_check
        _
      $region10: #{tpu_custom_call.1} parent=5 // pred_check_branch
        %157 = sbr.rel (%p154) target = $region12
      $region11: #{tpu_custom_call.1} parent=5 // pred_region
        %s158 = ssub.s32 %s13, 1
        // Predicated region
        $region13: #{tpu_custom_call.1} parent=11 // pred_check
          %p159 = pneg %p74
        $region14: #{tpu_custom_call.1} parent=11 // pred_check_branch
          %161 = sbr.rel (%p159) target = $region16
        $region15: #{tpu_custom_call.1} parent=11 // pred_region
          _
        $region16: #{tpu_custom_call.1} parent=11 // pred_fallthru
          _
        // Predicated region
        $region17: #{tpu_custom_call.1} parent=11 // pred_check
          %p162 = pneg %p95
        $region18: #{tpu_custom_call.1} parent=11 // pred_check_branch
          %164 = sbr.rel (%p162) target = $region20
        $region19: #{tpu_custom_call.1} parent=11 // pred_region
          _
        $region20: #{tpu_custom_call.1} parent=11 // pred_fallthru
          _
        // Predicated region
        $region21: #{tpu_custom_call.1} parent=11 // pred_check
          %p165 = pneg %p116
        $region22: #{tpu_custom_call.1} parent=11 // pred_check_branch
          %167 = sbr.rel (%p165) target = $region24
        $region23: #{tpu_custom_call.1} parent=11 // pred_region
          _
        $region24: #{tpu_custom_call.1} parent=11 // pred_fallthru
          _
      $region12: #{tpu_custom_call.1} parent=5 // pred_fallthru
        _
      %p168 = scmp.lt.s32.totalorder %s13, 2
      // Predicated region
      $region25: #{tpu_custom_call.1} parent=5 // pred_check
        %p169 = pneg %p168
      $region26: #{tpu_custom_call.1} parent=5 // pred_check_branch
        %171 = sbr.rel (%p169) target = $region28
      $region27: #{tpu_custom_call.1} parent=5 // pred_region
        // Predicated region
        $region29: #{tpu_custom_call.1} parent=27 // pred_check
          %p172 = pneg %p47
        $region30: #{tpu_custom_call.1} parent=27 // pred_check_branch
          %174 = sbr.rel (%p172) target = $region32
        $region31: #{tpu_custom_call.1} parent=27 // pred_region
          %s175 = smul.u32 16, %s21
          %p176 = scmp.lt.s32.totalorder %s20, 1
          %s177 = scalar_select %p176, %s20, 1
          %p178 = scmp.lt.s32.totalorder %s175, 15
          %s179 = scalar_select %p178, %s175, 15
          %s180 = smul.addr %s177, 16
          %s181 = sadd.s32 %s179, %s180
          %s182 = smul.addr %s181, 8
          %s183 = scalar_lea.vmem %s0, %s182
          %s184 = smul.u32 16, %s21
        $region32: #{tpu_custom_call.1} parent=27 // pred_fallthru
          _
      $region28: #{tpu_custom_call.1} parent=5 // pred_fallthru
        _
      %p185 = scmp.le.s32.totalorder 1, %s13
      %p186 = scmp.lt.s32.totalorder %s13, 3
      %p187 = pnand %p185, %p186
      %p188 = pneg %p187
      // Predicated region
      $region33: #{tpu_custom_call.1} parent=5 // pred_check
        _
      $region34: #{tpu_custom_call.1} parent=5 // pred_check_branch
        %190 = sbr.rel (%p187) target = $region36
      $region35: #{tpu_custom_call.1} parent=5 // pred_region
        %s191 = ssub.s32 %s13, 1
        %s192 = smul.u32 16, %s23
        %p193 = scmp.lt.s32.totalorder %s22, 1
        %s194 = scalar_select %p193, %s22, 1
        %p195 = scmp.lt.s32.totalorder %s192, 15
        %s196 = scalar_select %p195, %s192, 15
        %s197 = smul.addr %s194, 16
        %s198 = sadd.s32 %s196, %s197
        %s199 = smul.addr %s198, 8
        %s200 = scalar_lea.vmem %s0, %s199
        %p201 = pneg %p53
        %p202 = pneg %p50
        %p203 = pneg %p74
        %p204 = pneg %p71
        %p205 = pneg %p95
        %p206 = pneg %p92
        %p207 = pneg %p116
        %p208 = pneg %p113
        %p209 = pneg %p144
        %p210 = pneg %p141
        %s211 = sand.u32 %s131, 1
        %s212 = scalar_lea.sflag [#allocation3], %s211
        %s213 = sand.u32 %s131, 1
        %s214 = smul.addr %s213, 64
        %s215 = scalar_lea.vmem [#allocation2], %s214
        %s216 = smul.u32 16, %s23
        %p217 = scmp.lt.s32.totalorder %s22, 1
        %s218 = scalar_select %p217, %s22, 1
        %p219 = scmp.lt.s32.totalorder %s216, 15
        %s220 = scalar_select %p219, %s216, 15
        %s221 = smul.addr %s218, 16
        %s222 = sadd.s32 %s220, %s221
        %s223 = smul.addr %s222, 8
        %s224 = scalar_lea.vmem %s0, %s223
        %s225 = smul.u32 16, %s23
        %s226 = smul.u32 8, %s23
        %v227 = vld [vmem:[%s224] sm:$0xff]
        %v228 = vld [vmem:[%s224 + $0x8] sm:$0xff]
        %v229 = vld [vmem:[%s224 + $0x10] sm:$0xff]
        %v230 = vld [vmem:[%s224 + $0x18] sm:$0xff]
        %v231 = vld [vmem:[%s224 + $0x20] sm:$0xff]
        %v232 = vld [vmem:[%s224 + $0x28] sm:$0xff]
        %v233 = vld [vmem:[%s224 + $0x30] sm:$0xff]
        %v234 = vld [vmem:[%s224 + $0x38] sm:$0xff]
        %v235 = vld [vmem:[%s224 + $0x40] sm:$0xff]
        %v236 = vld [vmem:[%s224 + $0x48] sm:$0xff]
        %v237 = vld [vmem:[%s224 + $0x50] sm:$0xff]
        %v238 = vld [vmem:[%s224 + $0x58] sm:$0xff]
        %v239 = vld [vmem:[%s224 + $0x60] sm:$0xff]
        %v240 = vld [vmem:[%s224 + $0x68] sm:$0xff]
        %v241 = vld [vmem:[%s224 + $0x70] sm:$0xff]
        %v242 = vld [vmem:[%s224 + $0x78] sm:$0xff]
        %v243 = vld [vmem:[%s1] sm:$0x1]
        %v245 = vperm.slane %v243, 0
        %v247 = vmul.f32 %v227, %v245
        %v248 = vmul.f32 %v228, %v245
        %v249 = vmul.f32 %v229, %v245
        %v250 = vmul.f32 %v230, %v245
        %v251 = vmul.f32 %v231, %v245
        %v252 = vmul.f32 %v232, %v245
        %v253 = vmul.f32 %v233, %v245
        %v254 = vmul.f32 %v234, %v245
        %v255 = vmul.f32 %v235, %v245
        %v256 = vmul.f32 %v236, %v245
        %v257 = vmul.f32 %v237, %v245
        %v258 = vmul.f32 %v238, %v245
        %v259 = vmul.f32 %v239, %v245
        %v260 = vmul.f32 %v240, %v245
        %v261 = vmul.f32 %v241, %v245
        %v262 = vmul.f32 %v242, %v245
        %v263 = vld [vmem:[%s2] sm:$0x1]
        %v265 = vperm.slane %v263, 0
        %v267 = vadd.f32 %v247, %v265
        %v268 = vadd.f32 %v248, %v265
        %v269 = vadd.f32 %v249, %v265
        %v270 = vadd.f32 %v250, %v265
        %v271 = vadd.f32 %v251, %v265
        %v272 = vadd.f32 %v252, %v265
        %v273 = vadd.f32 %v253, %v265
        %v274 = vadd.f32 %v254, %v265
        %v275 = vadd.f32 %v255, %v265
        %v276 = vadd.f32 %v256, %v265
        %v277 = vadd.f32 %v257, %v265
        %v278 = vadd.f32 %v258, %v265
        %v279 = vadd.f32 %v259, %v265
        %v280 = vadd.f32 %v260, %v265
        %v281 = vadd.f32 %v261, %v265
        %v282 = vadd.f32 %v262, %v265
        %v283 = vmax.f32 %v267, 0.0
        %v284 = vmax.f32 %v268, 0.0
        %v285 = vmax.f32 %v269, 0.0
        %v286 = vmax.f32 %v270, 0.0
        %v287 = vmax.f32 %v271, 0.0
        %v288 = vmax.f32 %v272, 0.0
        %v289 = vmax.f32 %v273, 0.0
        %v290 = vmax.f32 %v274, 0.0
        %v291 = vmax.f32 %v275, 0.0
        %v292 = vmax.f32 %v276, 0.0
        %v293 = vmax.f32 %v277, 0.0
        %v294 = vmax.f32 %v278, 0.0
        %v295 = vmax.f32 %v279, 0.0
        %v296 = vmax.f32 %v280, 0.0
        %v297 = vmax.f32 %v281, 0.0
        %v298 = vmax.f32 %v282, 0.0
        %v299 = vadd.f32 %v283, %v284
        %v300 = vadd.f32 %v285, %v286
        %v301 = vadd.f32 %v287, %v288
        %v302 = vadd.f32 %v289, %v290
        %v303 = vadd.f32 %v291, %v292
        %v304 = vadd.f32 %v293, %v294
        %v305 = vadd.f32 %v295, %v296
        %v306 = vadd.f32 %v297, %v298
        %v307 = vld [vmem:[%s3] sm:$0xff]
        %vm308 = vcmask 64512
        %v310 = vsel %vm308, %v299, 0
        %v313 = vsel %vm308, %v300, 0
        %v316 = vsel %vm308, %v301, 0
        %v319 = vsel %vm308, %v302, 0
        %v322 = vsel %vm308, %v303, 0
        %v325 = vsel %vm308, %v304, 0
        %v328 = vsel %vm308, %v305, 0
        %v331 = vsel %vm308, %v306, 0
        %333 = vmatpush.msra.mxu0 0.0
        %334 = vmatpush.msra.mxu0 0.0
        %335 = vmatpush.msra.mxu0 0.0
        %336 = vmatpush.msra.mxu0 0.0
        %337 = vmatpush.msra.mxu0 0.0
        %338 = vmatpush.msra.mxu0 0.0
        %339 = vmatpush.msra.mxu0 0.0
        %340 = vmatpush.msra.mxu0 0.0
        %341 = vmatpush.msra.mxu0 0.0
        %342 = vmatpush.msra.mxu0 0.0
        %343 = vmatpush.msra.mxu0 0.0
        %344 = vmatpush.msra.mxu0 0.0
        %345 = vmatpush.msra.mxu0 0.0
        %346 = vmatpush.msra.mxu0 0.0
        %347 = vmatpush.msra.mxu0 0.0
        %348 = vmatpush.msra.mxu0 %v307
        %349 = vmatmul.f32.gmra.mxu0 %v310
        %v350 = vpop.f32.mrf.mxu0
        %v351 = vadd.f32 0.0, %v350
        %352 = vmatmul.f32.gmra.mxu0 %v313
        %v353 = vpop.f32.mrf.mxu0
        %v354 = vadd.f32 0.0, %v353
        %355 = vmatmul.f32.gmra.mxu0 %v316
        %v356 = vpop.f32.mrf.mxu0
        %v357 = vadd.f32 0.0, %v356
        %358 = vmatmul.f32.gmra.mxu0 %v319
        %v359 = vpop.f32.mrf.mxu0
        %v360 = vadd.f32 0.0, %v359
        %361 = vmatmul.f32.gmra.mxu0 %v322
        %v362 = vpop.f32.mrf.mxu0
        %v363 = vadd.f32 0.0, %v362
        %364 = vmatmul.f32.gmra.mxu0 %v325
        %v365 = vpop.f32.mrf.mxu0
        %v366 = vadd.f32 0.0, %v365
        %367 = vmatmul.f32.gmra.mxu0 %v328
        %v368 = vpop.f32.mrf.mxu0
        %v369 = vadd.f32 0.0, %v368
        %370 = vmatmul.f32.gmra.mxu0 %v331
        %v371 = vpop.f32.mrf.mxu0
        %v372 = vadd.f32 0.0, %v371
        %373 = vdwg.mxu0
        %374 = vst.msk [vmem:[%s215] sm:$0xff] %vm308, %v351
        %375 = vst.msk [vmem:[%s215 + $0x8] sm:$0xff] %vm308, %v354
        %376 = vst.msk [vmem:[%s215 + $0x10] sm:$0xff] %vm308, %v357
        %377 = vst.msk [vmem:[%s215 + $0x18] sm:$0xff] %vm308, %v360
        %378 = vst.msk [vmem:[%s215 + $0x20] sm:$0xff] %vm308, %v363
        %379 = vst.msk [vmem:[%s215 + $0x28] sm:$0xff] %vm308, %v366
        %380 = vst.msk [vmem:[%s215 + $0x30] sm:$0xff] %vm308, %v369
        %381 = vst.msk [vmem:[%s215 + $0x38] sm:$0xff] %vm308, %v372
        %s382 = sand.u32 %s131, 1
        %s383 = scalar_lea.sflag [#allocation3], %s382
        %s384 = sand.u32 %s131, 1
        %s385 = smul.addr %s384, 64
        %s386 = scalar_lea.vmem [#allocation2], %s385
        // Predicated region
        $region37: #{tpu_custom_call.1} parent=35 // pred_check
          %p387 = pneg %p141
        $region38: #{tpu_custom_call.1} parent=35 // pred_check_branch
          %389 = sbr.rel (%p387) target = $region40
        $region39: #{tpu_custom_call.1} parent=35 // pred_region
          %s390 = smul.u32 8, %s23
          %392 = vsyncadd %s383, 0
          %s393 = smul.addr %s22, 8
          %s394 = sadd.s32 %s390, %s393
          %s395 = smul.addr %s394, 8
          %s396 = scalar_lea.hbm %s4, %s395
          %s397 = sshll.u32 %s386, 4
          %s398 = int_to_ptr.vmem [resolvable:$true] %s397
          %s399 = sshll.u32 %s396, 4
          %s400 = int_to_ptr.hbm [resolvable:$true] %s399
          %405 = dma.vmem_to_hbm [thread:$0]  %s398, 1024, %s400, %s383, 128, 128, 8
        $region40: #{tpu_custom_call.1} parent=35 // pred_fallthru
          _
      $region36: #{tpu_custom_call.1} parent=5 // pred_fallthru
        _
      %p406 = scmp.le.s32.totalorder 2, %s13
      // Predicated region
      $region41: #{tpu_custom_call.1} parent=5 // pred_check
        %p407 = pneg %p406
      $region42: #{tpu_custom_call.1} parent=5 // pred_check_branch
        %409 = sbr.rel (%p407) target = $region44
      $region43: #{tpu_custom_call.1} parent=5 // pred_region
        %s410 = ssub.s32 %s13, 2
        // Predicated region
        $region45: #{tpu_custom_call.1} parent=43 // pred_check
          %p411 = pneg %p147
        $region46: #{tpu_custom_call.1} parent=43 // pred_check_branch
          %413 = sbr.rel (%p411) target = $region48
        $region47: #{tpu_custom_call.1} parent=43 // pred_region
          %s414 = sand.u32 %s132, 1
          %s415 = scalar_lea.sflag [#allocation3], %s414
          %s416 = sand.u32 %s132, 1
          %s417 = smul.addr %s416, 64
          %s418 = scalar_lea.vmem [#allocation2], %s417
          %420 = dma.done %s415, 1024
        $region48: #{tpu_custom_call.1} parent=43 // pred_fallthru
          _
      $region44: #{tpu_custom_call.1} parent=5 // pred_fallthru
        _
    $region6: #{tpu_custom_call.1} parent=1 // loop_footer
      %s17 = sadd.s32 1, %s13
    $region7: #{tpu_custom_call.1} parent=1 // loop_footer_branch
      %12 = sbr.rel target = $region3
    $region8: #{tpu_custom_call.1} parent=1 // loop_exit
      _
    %421 = vsyncpa [#allocation3], 1
    %s422 = scalar_lea.sflag [#allocation3], 1
    %423 = vsyncpa %s422, 1

</llo_original>
